<compile_context>
chip_gen: v7x
topology: tpu7x:2x2x1
jax: 0.10.0
libtpu: 0.0.40
codegen_flags: <defaults>
</compile_context>

<pallas_src>
import functools

import numpy as np
import jax
import jax.numpy as jnp
from jax.experimental import pallas as pl
from jax.experimental.pallas import tpu as pltpu


# ----------------------------------------------------------------------------
# Pallas kernel
# ----------------------------------------------------------------------------
def _dequant_kernel(bits_ref, w_ref, o_ref, *, half_step):
    """Fused Bit2Num + dequantize.

    bits_ref: (TN, L) int8 bit tensor (values 0 / 1), L lane-dense
    w_ref:    (L, M)  bf16 constant weights: W[m*B+i, m] = 2^(B-1-i)/2^B
    o_ref:    (TN, M) dequantized output, M lane-dense (multiple of 128)
    """
    bits = bits_ref[...].astype(jnp.bfloat16)            # VPU widen, under DMA
    num = jnp.dot(bits, w_ref[...],
                  preferred_element_type=jnp.float32)     # MXU, K = L, exact
    o_ref[...] = (num + half_step).astype(o_ref.dtype)    # single vadd epilogue


def _round_up(x, m):
    return ((x + m - 1) // m) * m


def make_dequantizer(N, L, B, out_dtype=jnp.float32):
    """Build a jit-able dequantizer for bit tensors of shape (N, L), B bits/value."""
    assert L % B == 0, "bit width must divide the bit-vector length"
    M = L // B
    step = float(2 ** B)

    # Constant bit-to-number weight matrix with the 1/2^B dequant scale folded
    # in (MSB-first, matches Bit2Num exactly). All values are powers of two,
    # hence exact in bf16; per-row sums are exact in the f32 accumulator.
    w_np = np.zeros((L, M), np.float32)
    cols = np.arange(M)
    for i in range(B):
        w_np[cols * B + i, cols] = 2.0 ** (-(1 + i))      # 2^(B-1-i) / 2^B
    w = jnp.asarray(w_np, dtype=jnp.bfloat16)

    # Large sublane-aligned row tile; ragged last block handled via cdiv grid
    # (Pallas masks the out-of-bounds rows on writeback).
    TN = min(1024, _round_up(N, 8))
    grid = (pl.cdiv(N, TN),)

    kernel = functools.partial(_dequant_kernel, half_step=0.5 / step)
    call = pl.pallas_call(
        kernel,
        out_shape=jax.ShapeDtypeStruct((N, M), out_dtype),
        grid=grid,
        in_specs=[
            pl.BlockSpec((TN, L), lambda i: (i, 0)),   # per-tile bit rows (int8)
            pl.BlockSpec((L, M), lambda i: (0, 0)),    # weights, resident
        ],
        out_specs=pl.BlockSpec((TN, M), lambda i: (i, 0)),
        compiler_params=pltpu.CompilerParams(
            dimension_semantics=("parallel",),         # independent row tiles
            vmem_limit_bytes=32 * 1024 * 1024,         # safe on v5e/v6e/v7x
        ),
    )

    def apply(x_bits):
        # Feed the bits in a narrow dtype; no wrapper-side f32 pass.
        if x_bits.dtype != jnp.int8:
            x_bits = x_bits.astype(jnp.int8)
        return call(x_bits, w)

    return apply


# ----------------------------------------------------------------------------
# Self-test
# ----------------------------------------------------------------------------
if __name__ == "__main__":
    B_QUANT = 4          # bits per quantized value (DequantizationLayer(B=4))
    FEEDBACK_BITS = 512  # bit-vector length per sample
    N = 2                # batch

    key = jax.random.PRNGKey(0)
    bits = jax.random.bernoulli(key, 0.5, (N, FEEDBACK_BITS)).astype(jnp.int8)

    dequant = jax.jit(make_dequantizer(N, FEEDBACK_BITS, B_QUANT))
    out = jax.block_until_ready(dequant(bits))

    # Pure-JAX reference of Bit2Num + (num + 0.5)/2^B
    M = FEEDBACK_BITS // B_QUANT
    b3 = bits.astype(jnp.float32).reshape(N, M, B_QUANT)
    exps = (2.0 ** jnp.arange(B_QUANT - 1, -1, -1)).astype(jnp.float32)
    ref = (jnp.sum(b3 * exps[None, None, :], axis=-1) + 0.5) / float(2 ** B_QUANT)

    assert out.shape == (N, M), out.shape
    assert bool(jnp.all(jnp.isfinite(out)))
    np.testing.assert_allclose(np.asarray(out), np.asarray(ref), rtol=0.0, atol=1e-6)
    print("KERNEL_OK")
</pallas_src>

<mosaic_0001>
module attributes {stable_mosaic.version = 11 : i64} {
  func.func @_dequant_kernel(%arg0: i32, %arg1: memref<8x512xi8, #tpu.memory_space<vmem>>, %arg2: memref<512x128xbf16, #tpu.memory_space<vmem>>, %arg3: memref<8x128xf32, #tpu.memory_space<vmem>>) attributes {dimension_semantics = [#tpu.dimension_semantics<parallel>], iteration_bounds = array<i64: 1>, scalar_prefetch = 0 : i64, scratch_operands = 0 : i64, tpu.core_type = #tpu.core_type<tc>, window_params = [{transform_indices = @transform_0, window_bounds = array<i64: 8, 512>}, {pipeline_mode = #tpu.pipeline_mode<synchronous>, transform_indices = @transform_1, window_bounds = array<i64: 512, 128>}, {transform_indices = @transform_2, window_bounds = array<i64: 8, 128>}]} {
    %c0 = arith.constant 0 : index
    %c0_0 = arith.constant 0 : index
    %0 = vector.load %arg1[%c0, %c0_0] : memref<8x512xi8, #tpu.memory_space<vmem>>, vector<8x512xi8>
    %1 = arith.sitofp %0 : vector<8x512xi8> to vector<8x512xbf16>
    %c0_1 = arith.constant 0 : index
    %c0_2 = arith.constant 0 : index
    %2 = vector.load %arg2[%c0_1, %c0_2] : memref<512x128xbf16, #tpu.memory_space<vmem>>, vector<512x128xbf16>
    %cst = arith.constant dense<0.000000e+00> : vector<8x128xf32>
    %3 = tpu.matmul %1, %2, %cst {dimension_numbers = #tpu.dot_dimension_numbers<[1], [0], [0], [1], [0, 0, 1, 1], [], []>} : vector<8x512xbf16>, vector<512x128xbf16>, vector<8x128xf32> -> vector<8x128xf32>
    %cst_3 = arith.constant 3.125000e-02 : f32
    %4 = vector.broadcast %cst_3 : f32 to vector<8x128xf32>
    %5 = arith.addf %3, %4 : vector<8x128xf32>
    %c0_4 = arith.constant 0 : index
    %c0_5 = arith.constant 0 : index
    %6 = vector.load %arg3[%c0_4, %c0_5] : memref<8x128xf32, #tpu.memory_space<vmem>>, vector<8x128xf32>
    tpu.vector_store %arg3[%c0_4, %c0_5], %5 {strides = array<i32>} : memref<8x128xf32, #tpu.memory_space<vmem>>, vector<8x128xf32>,
    return
  }
  func.func @transform_0(%arg0: i32) -> (i32, i32) {
    %c0_i32 = arith.constant 0 : i32
    %c0_i32_0 = arith.constant 0 : i32
    return %arg0, %c0_i32 : i32, i32
  }
  func.func @transform_1(%arg0: i32) -> (i32, i32) {
    %c0_i32 = arith.constant 0 : i32
    %c0_i32_0 = arith.constant 0 : i32
    %c0_i32_1 = arith.constant 0 : i32
    return %c0_i32, %c0_i32_0 : i32, i32
  }
  func.func @transform_2(%arg0: i32) -> (i32, i32) {
    %c0_i32 = arith.constant 0 : i32
    %c0_i32_0 = arith.constant 0 : i32
    return %arg0, %c0_i32 : i32, i32
  }
}

</mosaic_0001>

<llo_original>
// kernel: apply.1
$region0: #{apply.1}
  #allocation0 [shape = 'u32[]', space=smem, size = 0x4, offset = 0x4, fixed_abs, tag = 'smem constant byte address 0x4 - core index']
  #allocation1 [shape = 'u32[144,128]{1,0:T(1,128)}', space=vmem, size = 0x12000, scoped, tag = 'internal scratch']
  %s0 = inlined_call_operand.hbm [shape: s8[2,512], index: 0, kind: input, shape index: {}]
  %s1 = inlined_call_operand.hbm [shape: bf16[512,128], index: 1, kind: input, shape index: {}]
  %s2 = inlined_call_operand.hbm [shape: f32[2,128], index: 2, kind: output, shape index: {}]
  %s3 = sld [smem:[#allocation0]]
  $region26: #{apply.1} parent=0
    _
  %s5 = ssub.s32 1, %s3
  %s6 = scalar_select 0, %s5, %s3
  $region1: #{apply.1} parent=0
    #allocation2 [shape = 'u8[4096]{0}', space=vmem, size = 0x1000, scoped, tag = 'input window, operand 0, single buffered']
    #allocation3 [shape = 's32[1]{0}', space=sflag, size = 0x4, scoped, tag = 'scoped memory for apply.1']
    #allocation4 [shape = 's32[1]{0}', space=sflag, size = 0x4, scoped, tag = 'scoped memory for apply.1']
    #allocation5 [shape = 'u8[131072]{0}', space=vmem, size = 0x20000, scoped, tag = 'input window, operand 1, single buffered']
    #allocation6 [shape = 's32[1]{0}', space=sflag, size = 0x4, scoped, tag = 'scoped memory for apply.1']
    #allocation7 [shape = 'u8[4096]{0}', space=vmem, size = 0x1000, scoped, tag = 'output window, operand 0, single buffered']
    %7 = vsyncpa [#allocation3], 0
    %8 = vsyncpa [#allocation6], 0
    %9 = vsyncpa [#allocation4], 0
    // Predicated region
    $region2: #{apply.1} parent=1 // pred_check
      _
    $region3: #{apply.1} parent=1 // pred_check_branch
      %11 = sbr.rel (0) target = $region5
    $region4: #{apply.1} parent=1 // pred_region
      %s13 = ssub.s32 128, 64
      %14 = vsyncadd [#allocation3], %s13
      %s15 = sshll.u32 [#allocation2], 4
      %s16 = int_to_ptr.vmem [resolvable:$true] %s15
      %21 = dma.hbm_to_vmem [thread:$0]  %s0, 64, %s16, [#allocation3], 64, 64, 4
    $region5: #{apply.1} parent=1 // pred_fallthru
      _
    // Predicated region
    $region6: #{apply.1} parent=1 // pred_check
      _
    $region7: #{apply.1} parent=1 // pred_check_branch
      %23 = sbr.rel (0) target = $region9
    $region8: #{apply.1} parent=1 // pred_region
      %s25 = ssub.s32 4096, 4096
      %26 = vsyncadd [#allocation6], %s25
      %s27 = sshll.u32 [#allocation5], 4
      %s28 = int_to_ptr.vmem [resolvable:$true] %s27
      %33 = dma.hbm_to_vmem [thread:$0]  %s1, 4096, %s28, [#allocation6], 64, 64, 4
    $region9: #{apply.1} parent=1 // pred_fallthru
      _
    // Predicated region
    $region10: #{apply.1} parent=1 // pred_check
      _
    $region11: #{apply.1} parent=1 // pred_check_branch
      %35 = sbr.rel (0) target = $region13
    $region12: #{apply.1} parent=1 // pred_region
      %36 = dma.done [#allocation3], 128
    $region13: #{apply.1} parent=1 // pred_fallthru
      _
    // Predicated region
    $region14: #{apply.1} parent=1 // pred_check
      _
    $region15: #{apply.1} parent=1 // pred_check_branch
      %38 = sbr.rel (0) target = $region17
    $region16: #{apply.1} parent=1 // pred_region
      %39 = dma.done [#allocation6], 4096
    $region17: #{apply.1} parent=1 // pred_fallthru
      _
    %v41 = vld [vmem:[#allocation2] sm:$0xf]
    %v42 = vld [vmem:[#allocation2 + $0x4] sm:$0xf]
    %v43 = vcombine.low %v41, %v42
    %v45 = vunpack.c.l.s4 1935823168
    %v46 = vunpack.c.0.s8 %v45
    %v47 = vlaneseq
    %v48 = vshrl.u32 %v47, 7
    %v49 = vsub.s32 %v46, %v48
    %v50 = vrot.slane %v43, %v49
    %v51 = vunpack.c.l.s8.bf16 %v50
    %v52 = vunpack.c.h.s8.bf16 %v50
    %v53 = vld [vmem:[#allocation5] sm:$0xf]
    %v54 = vld [vmem:[#allocation5 + $0x4] sm:$0xf]
    %v55 = vld [vmem:[#allocation5 + $0x8] sm:$0xf]
    %v56 = vld [vmem:[#allocation5 + $0xc] sm:$0xf]
    %v57 = vld [vmem:[#allocation5 + $0x10] sm:$0xf]
    %v58 = vld [vmem:[#allocation5 + $0x14] sm:$0xf]
    %v59 = vld [vmem:[#allocation5 + $0x18] sm:$0xf]
    %v60 = vld [vmem:[#allocation5 + $0x1c] sm:$0xf]
    %v61 = vld [vmem:[#allocation5 + $0x20] sm:$0xf]
    %v62 = vld [vmem:[#allocation5 + $0x24] sm:$0xf]
    %v63 = vld [vmem:[#allocation5 + $0x28] sm:$0xf]
    %v64 = vld [vmem:[#allocation5 + $0x2c] sm:$0xf]
    %v65 = vld [vmem:[#allocation5 + $0x30] sm:$0xf]
    %v66 = vld [vmem:[#allocation5 + $0x34] sm:$0xf]
    %v67 = vld [vmem:[#allocation5 + $0x38] sm:$0xf]
    %v68 = vld [vmem:[#allocation5 + $0x3c] sm:$0xf]
    %v69 = vld [vmem:[#allocation5 + $0x40] sm:$0xf]
    %v70 = vld [vmem:[#allocation5 + $0x44] sm:$0xf]
    %v71 = vld [vmem:[#allocation5 + $0x48] sm:$0xf]
    %v72 = vld [vmem:[#allocation5 + $0x4c] sm:$0xf]
    %v73 = vld [vmem:[#allocation5 + $0x50] sm:$0xf]
    %v74 = vld [vmem:[#allocation5 + $0x54] sm:$0xf]
    %v75 = vld [vmem:[#allocation5 + $0x58] sm:$0xf]
    %v76 = vld [vmem:[#allocation5 + $0x5c] sm:$0xf]
    %v77 = vld [vmem:[#allocation5 + $0x60] sm:$0xf]
    %v78 = vld [vmem:[#allocation5 + $0x64] sm:$0xf]
    %v79 = vld [vmem:[#allocation5 + $0x68] sm:$0xf]
    %v80 = vld [vmem:[#allocation5 + $0x6c] sm:$0xf]
    %v81 = vld [vmem:[#allocation5 + $0x70] sm:$0xf]
    %v82 = vld [vmem:[#allocation5 + $0x74] sm:$0xf]
    %v83 = vld [vmem:[#allocation5 + $0x78] sm:$0xf]
    %v84 = vld [vmem:[#allocation5 + $0x7c] sm:$0xf]
    %v85 = vld [vmem:[#allocation5 + $0x80] sm:$0xf]
    %v86 = vld [vmem:[#allocation5 + $0x84] sm:$0xf]
    %v87 = vld [vmem:[#allocation5 + $0x88] sm:$0xf]
    %v88 = vld [vmem:[#allocation5 + $0x8c] sm:$0xf]
    %v89 = vld [vmem:[#allocation5 + $0x90] sm:$0xf]
    %v90 = vld [vmem:[#allocation5 + $0x94] sm:$0xf]
    %v91 = vld [vmem:[#allocation5 + $0x98] sm:$0xf]
    %v92 = vld [vmem:[#allocation5 + $0x9c] sm:$0xf]
    %v93 = vld [vmem:[#allocation5 + $0xa0] sm:$0xf]
    %v94 = vld [vmem:[#allocation5 + $0xa4] sm:$0xf]
    %v95 = vld [vmem:[#allocation5 + $0xa8] sm:$0xf]
    %v96 = vld [vmem:[#allocation5 + $0xac] sm:$0xf]
    %v97 = vld [vmem:[#allocation5 + $0xb0] sm:$0xf]
    %v98 = vld [vmem:[#allocation5 + $0xb4] sm:$0xf]
    %v99 = vld [vmem:[#allocation5 + $0xb8] sm:$0xf]
    %v100 = vld [vmem:[#allocation5 + $0xbc] sm:$0xf]
    %v101 = vld [vmem:[#allocation5 + $0xc0] sm:$0xf]
    %v102 = vld [vmem:[#allocation5 + $0xc4] sm:$0xf]
    %v103 = vld [vmem:[#allocation5 + $0xc8] sm:$0xf]
    %v104 = vld [vmem:[#allocation5 + $0xcc] sm:$0xf]
    %v105 = vld [vmem:[#allocation5 + $0xd0] sm:$0xf]
    %v106 = vld [vmem:[#allocation5 + $0xd4] sm:$0xf]
    %v107 = vld [vmem:[#allocation5 + $0xd8] sm:$0xf]
    %v108 = vld [vmem:[#allocation5 + $0xdc] sm:$0xf]
    %v109 = vld [vmem:[#allocation5 + $0xe0] sm:$0xf]
    %v110 = vld [vmem:[#allocation5 + $0xe4] sm:$0xf]
    %v111 = vld [vmem:[#allocation5 + $0xe8] sm:$0xf]
    %v112 = vld [vmem:[#allocation5 + $0xec] sm:$0xf]
    %v113 = vld [vmem:[#allocation5 + $0xf0] sm:$0xf]
    %v114 = vld [vmem:[#allocation5 + $0xf4] sm:$0xf]
    %v115 = vld [vmem:[#allocation5 + $0xf8] sm:$0xf]
    %v116 = vld [vmem:[#allocation5 + $0xfc] sm:$0xf]
    %v119 = vunpack.c.l.b16 %v51
    %v120 = vunpack.c.h.b16 %v51
    %v121 = vunpack.c.l.b16 %v52
    %v122 = vunpack.c.h.b16 %v52
    %v123 = vpack.c.b16 %v119, %v119
    %v124 = vpack.c.b16 %v120, %v120
    %v125 = vpack.c.b16 %v121, %v121
    %v126 = vpack.c.b16 %v122, %v122
    %v195 = vunpack.c.l.b16 %v53
    %v196 = vunpack.c.l.b16 %v54
    %v197 = vunpack.c.l.b16 %v55
    %v198 = vunpack.c.l.b16 %v56
    %v199 = vunpack.c.l.b16 %v57
    %v200 = vunpack.c.l.b16 %v58
    %v201 = vunpack.c.l.b16 %v59
    %v202 = vunpack.c.l.b16 %v60
    %v203 = vunpack.c.l.b16 %v61
    %v204 = vunpack.c.l.b16 %v62
    %v205 = vunpack.c.l.b16 %v63
    %v206 = vunpack.c.l.b16 %v64
    %v207 = vunpack.c.l.b16 %v65
    %v208 = vunpack.c.l.b16 %v66
    %v209 = vunpack.c.l.b16 %v67
    %v210 = vunpack.c.l.b16 %v68
    %v211 = vunpack.c.l.b16 %v69
    %v212 = vunpack.c.l.b16 %v70
    %v213 = vunpack.c.l.b16 %v71
    %v214 = vunpack.c.l.b16 %v72
    %v215 = vunpack.c.l.b16 %v73
    %v216 = vunpack.c.l.b16 %v74
    %v217 = vunpack.c.l.b16 %v75
    %v218 = vunpack.c.l.b16 %v76
    %v219 = vunpack.c.l.b16 %v77
    %v220 = vunpack.c.l.b16 %v78
    %v221 = vunpack.c.l.b16 %v79
    %v222 = vunpack.c.l.b16 %v80
    %v223 = vunpack.c.l.b16 %v81
    %v224 = vunpack.c.l.b16 %v82
    %v225 = vunpack.c.l.b16 %v83
    %v226 = vunpack.c.l.b16 %v84
    %v227 = vunpack.c.l.b16 %v85
    %v228 = vunpack.c.l.b16 %v86
    %v229 = vunpack.c.l.b16 %v87
    %v230 = vunpack.c.l.b16 %v88
    %v231 = vunpack.c.l.b16 %v89
    %v232 = vunpack.c.l.b16 %v90
    %v233 = vunpack.c.l.b16 %v91
    %v234 = vunpack.c.l.b16 %v92
    %v235 = vunpack.c.l.b16 %v93
    %v236 = vunpack.c.l.b16 %v94
    %v237 = vunpack.c.l.b16 %v95
    %v238 = vunpack.c.l.b16 %v96
    %v239 = vunpack.c.l.b16 %v97
    %v240 = vunpack.c.l.b16 %v98
    %v241 = vunpack.c.l.b16 %v99
    %v242 = vunpack.c.l.b16 %v100
    %v243 = vunpack.c.l.b16 %v101
    %v244 = vunpack.c.l.b16 %v102
    %v245 = vunpack.c.l.b16 %v103
    %v246 = vunpack.c.l.b16 %v104
    %v247 = vunpack.c.l.b16 %v105
    %v248 = vunpack.c.l.b16 %v106
    %v249 = vunpack.c.l.b16 %v107
    %v250 = vunpack.c.l.b16 %v108
    %v251 = vunpack.c.l.b16 %v109
    %v252 = vunpack.c.l.b16 %v110
    %v253 = vunpack.c.l.b16 %v111
    %v254 = vunpack.c.l.b16 %v112
    %v255 = vunpack.c.l.b16 %v113
    %v256 = vunpack.c.l.b16 %v114
    %v257 = vunpack.c.l.b16 %v115
    %v258 = vunpack.c.l.b16 %v116
    %v259 = vpack.c.b16 %v196, %v195
    %v260 = vpack.c.b16 %v198, %v197
    %v261 = vpack.c.b16 %v200, %v199
    %v262 = vpack.c.b16 %v202, %v201
    %v263 = vpack.c.b16 %v204, %v203
    %v264 = vpack.c.b16 %v206, %v205
    %v265 = vpack.c.b16 %v208, %v207
    %v266 = vpack.c.b16 %v210, %v209
    %v267 = vpack.c.b16 %v212, %v211
    %v268 = vpack.c.b16 %v214, %v213
    %v269 = vpack.c.b16 %v216, %v215
    %v270 = vpack.c.b16 %v218, %v217
    %v271 = vpack.c.b16 %v220, %v219
    %v272 = vpack.c.b16 %v222, %v221
    %v273 = vpack.c.b16 %v224, %v223
    %v274 = vpack.c.b16 %v226, %v225
    %v275 = vpack.c.b16 %v228, %v227
    %v276 = vpack.c.b16 %v230, %v229
    %v277 = vpack.c.b16 %v232, %v231
    %v278 = vpack.c.b16 %v234, %v233
    %v279 = vpack.c.b16 %v236, %v235
    %v280 = vpack.c.b16 %v238, %v237
    %v281 = vpack.c.b16 %v240, %v239
    %v282 = vpack.c.b16 %v242, %v241
    %v283 = vpack.c.b16 %v244, %v243
    %v284 = vpack.c.b16 %v246, %v245
    %v285 = vpack.c.b16 %v248, %v247
    %v286 = vpack.c.b16 %v250, %v249
    %v287 = vpack.c.b16 %v252, %v251
    %v288 = vpack.c.b16 %v254, %v253
    %v289 = vpack.c.b16 %v256, %v255
    %v290 = vpack.c.b16 %v258, %v257
    %323 = vmatprep.subr.bf16.mxu0 0
    %324 = vmatpush1.bf16.msra.mxu0 %v259
    %325 = vmatprep.subr.bf16.mxu0 0
    %326 = vmatpush1.bf16.msra.mxu0 %v260
    %327 = vmatprep.subr.bf16.mxu0 0
    %328 = vmatpush1.bf16.msra.mxu0 %v261
    %329 = vmatprep.subr.bf16.mxu0 0
    %330 = vmatpush1.bf16.msra.mxu0 %v262
    %331 = vmatprep.subr.bf16.mxu0 0
    %332 = vmatpush1.bf16.msra.mxu0 %v263
    %333 = vmatprep.subr.bf16.mxu0 0
    %334 = vmatpush1.bf16.msra.mxu0 %v264
    %335 = vmatprep.subr.bf16.mxu0 0
    %336 = vmatpush1.bf16.msra.mxu0 %v265
    %337 = vmatprep.subr.bf16.mxu0 0
    %338 = vmatpush1.bf16.msra.mxu0 %v266
    %339 = vmatprep.subr.bf16.mxu0 0
    %340 = vmatpush1.bf16.msra.mxu0 %v267
    %341 = vmatprep.subr.bf16.mxu0 0
    %342 = vmatpush1.bf16.msra.mxu0 %v268
    %343 = vmatprep.subr.bf16.mxu0 0
    %344 = vmatpush1.bf16.msra.mxu0 %v269
    %345 = vmatprep.subr.bf16.mxu0 0
    %346 = vmatpush1.bf16.msra.mxu0 %v270
    %347 = vmatprep.subr.bf16.mxu0 0
    %348 = vmatpush1.bf16.msra.mxu0 %v271
    %349 = vmatprep.subr.bf16.mxu0 0
    %350 = vmatpush1.bf16.msra.mxu0 %v272
    %351 = vmatprep.subr.bf16.mxu0 0
    %352 = vmatpush1.bf16.msra.mxu0 %v273
    %353 = vmatprep.subr.bf16.mxu0 0
    %354 = vmatpush1.bf16.msra.mxu0 %v274
    %355 = vmatprep.mubr.bf16.mxu0 %v124
    %356 = vmatmul.mubr.bf16.gmra.mrb[0].mxu0 %v123
    %v357 = vpop.f32.mrb[0].mxu0
    %v358 = vadd.f32 0.03125, %v357
    %v359 = vpop.f32.mrb[0].mxu0
    %v360 = vpop.f32.mrb[0].mxu0
    %v361 = vpop.f32.mrb[0].mxu0
    %362 = vdwg.mxu0
    %363 = vmatprep.subr.bf16.mxu0 0
    %364 = vmatpush1.bf16.msra.mxu0 %v275
    %365 = vmatprep.subr.bf16.mxu0 0
    %366 = vmatpush1.bf16.msra.mxu0 %v276
    %367 = vmatprep.subr.bf16.mxu0 0
    %368 = vmatpush1.bf16.msra.mxu0 %v277
    %369 = vmatprep.subr.bf16.mxu0 0
    %370 = vmatpush1.bf16.msra.mxu0 %v278
    %371 = vmatprep.subr.bf16.mxu0 0
    %372 = vmatpush1.bf16.msra.mxu0 %v279
    %373 = vmatprep.subr.bf16.mxu0 0
    %374 = vmatpush1.bf16.msra.mxu0 %v280
    %375 = vmatprep.subr.bf16.mxu0 0
    %376 = vmatpush1.bf16.msra.mxu0 %v281
    %377 = vmatprep.subr.bf16.mxu0 0
    %378 = vmatpush1.bf16.msra.mxu0 %v282
    %379 = vmatprep.subr.bf16.mxu0 0
    %380 = vmatpush1.bf16.msra.mxu0 %v283
    %381 = vmatprep.subr.bf16.mxu0 0
    %382 = vmatpush1.bf16.msra.mxu0 %v284
    %383 = vmatprep.subr.bf16.mxu0 0
    %384 = vmatpush1.bf16.msra.mxu0 %v285
    %385 = vmatprep.subr.bf16.mxu0 0
    %386 = vmatpush1.bf16.msra.mxu0 %v286
    %387 = vmatprep.subr.bf16.mxu0 0
    %388 = vmatpush1.bf16.msra.mxu0 %v287
    %389 = vmatprep.subr.bf16.mxu0 0
    %390 = vmatpush1.bf16.msra.mxu0 %v288
    %391 = vmatprep.subr.bf16.mxu0 0
    %392 = vmatpush1.bf16.msra.mxu0 %v289
    %393 = vmatprep.subr.bf16.mxu0 0
    %394 = vmatpush1.bf16.msra.mxu0 %v290
    %395 = vmatprep.mubr.bf16.mxu0 %v126
    %396 = vmatmul.mubr.bf16.gmra.mrb[0].mxu0 %v125
    %v397 = vpop.f32.mrb[0].mxu0
    %v398 = vadd.f32 %v358, %v397
    %v399 = vpop.f32.mrb[0].mxu0
    %v400 = vpop.f32.mrb[0].mxu0
    %v401 = vpop.f32.mrb[0].mxu0
    %402 = vdwg.mxu0
    %403 = vst [vmem:[#allocation7] sm:$0xff] %v398
    // Predicated region
    $region18: #{apply.1} parent=1 // pred_check
      _
    $region19: #{apply.1} parent=1 // pred_check_branch
      %405 = sbr.rel (0) target = $region21
    $region20: #{apply.1} parent=1 // pred_region
      %s407 = ssub.s32 128, 32
      %408 = vsyncadd [#allocation4], %s407
      %s409 = sshll.u32 [#allocation7], 4
      %s410 = int_to_ptr.vmem [resolvable:$true] %s409
      %415 = dma.vmem_to_hbm [thread:$0]  %s410, 32, %s2, [#allocation4], 32, 32, 2
    $region21: #{apply.1} parent=1 // pred_fallthru
      _
    // Predicated region
    $region22: #{apply.1} parent=1 // pred_check
      _
    $region23: #{apply.1} parent=1 // pred_check_branch
      %417 = sbr.rel (0) target = $region25
    $region24: #{apply.1} parent=1 // pred_region
      %418 = dma.done [#allocation4], 128
    $region25: #{apply.1} parent=1 // pred_fallthru
      _
    %419 = vsyncpa [#allocation3], 1
    %420 = vsyncpa [#allocation6], 1
    %421 = vsyncpa [#allocation4], 1

</llo_original>
